<compile_context>
chip_gen: v7x
topology: tpu7x:2x2x1
jax: 0.10.0
libtpu: 0.0.40
codegen_flags: <defaults>
</compile_context>

<pallas_src>
import functools
import inspect

import jax
import jax.numpy as jnp
from jax.experimental import pallas as pl
from jax.experimental.pallas import tpu as pltpu


def _round_up(x: int, m: int) -> int:
    return ((x + m - 1) // m) * m


def _round_down(x: int, m: int) -> int:
    return (x // m) * m


def _vmem_capacity_bytes() -> int:
    """Physical VMEM of the current generation (64 MiB/TC v7x, 128 MiB v5e/v6e)."""
    try:
        return int(pltpu.get_tpu_info().vmem_capacity_bytes)
    except Exception:
        return 64 * 1024 * 1024  # conservative fallback (v7x per-core)


try:
    _HAS_PIPELINE_MODE = (hasattr(pl, "Buffered")
                          and "pipeline_mode" in inspect.signature(pl.BlockSpec).parameters)
except Exception:
    _HAS_PIPELINE_MODE = False


def metric_kernel(embeds_ref, wt_ref, b_ref, z_ref, acc_ref, *,
                  inv_s: float, seq_len: int, ts: int, mask_seq: bool):
    """One (B-block, S-block) grid step.

    embeds_ref: (tb, ts, H) streamed tile of embeddings (input dtype, no wholesale upcast)
    wt_ref    : (H, H) pre-transposed Linear weight (W.T), resident across the grid
    b_ref     : (1, H) f32 bias, resident across the grid
    z_ref     : (tb, H) f32 output tile (written only at the final S step)
    acc_ref   : (tb, H) f32 VMEM accumulator scratch
    """
    s = pl.program_id(1)

    @pl.when(s == 0)
    def _():
        acc_ref[...] = jnp.zeros_like(acc_ref)

    # Hot loop: sum this S tile into the f32 accumulator.  Cheap vs. the HBM DMA (~8x slack),
    # so the optional ragged-S mask and the cross-sublane reduce stay hidden under the stream.
    tile = embeds_ref[...]
    if mask_seq:
        # Last S tile extends past the real sequence length; mask the undefined tail rows
        # (they may be arbitrary data, so a multiplicative trick would not be safe).
        pos = jax.lax.broadcasted_iota(jnp.int32, tile.shape, 1) + s * ts
        tile = jnp.where(pos < seq_len, tile, jnp.zeros_like(tile))
    acc_ref[...] += jnp.sum(tile, axis=1, dtype=jnp.float32)

    @pl.when(s == pl.num_programs(1) - 1)
    def _():
        # mean_rep pooling: single 1/S scale at finalize (mean over the ORIGINAL S).
        pooled = acc_ref[...] * jnp.float32(inv_s)                     # (tb, H) f32
        # MLPLayer: tanh(pooled @ W.T + b); weight already transposed (and possibly bf16).
        y = jnp.dot(pooled.astype(wt_ref.dtype), wt_ref[...],
                    preferred_element_type=jnp.float32)
        z_ref[...] = jnp.tanh(y + b_ref[...]).astype(z_ref.dtype)


def _build_and_run(embeds, wt, b2, *, grid, tb, ts, H, mask_seq, inv_s, seq_len,
                   vmem_limit, cost, out_dtype, single_buffer_consts):
    B = embeds.shape[0]

    def const_spec(shape):
        if single_buffer_consts:
            # Grid-invariant operands: 1 buffer instead of the default 2 -> the freed VMEM
            # goes straight into bigger streaming tiles (matters most on v7x's 64 MiB VMEM).
            return pl.BlockSpec(shape, lambda b, s: (0, 0), pipeline_mode=pl.Buffered(1))
        return pl.BlockSpec(shape, lambda b, s: (0, 0))

    kernel = functools.partial(metric_kernel, inv_s=inv_s, seq_len=seq_len, ts=ts,
                               mask_seq=mask_seq)

    return pl.pallas_call(
        kernel,
        out_shape=jax.ShapeDtypeStruct((B, H), out_dtype),
        grid_spec=pltpu.PrefetchScalarGridSpec(
            num_scalar_prefetch=0,
            grid=grid,
            in_specs=[
                # Streaming embeds tiles, double-buffered by the Pallas pipeline.
                # Last block dim == full H (legal for any H, no lane padding needed).
                pl.BlockSpec((tb, ts, H), lambda b, s: (b, s, 0)),
                const_spec((H, H)),     # weight, resident
                const_spec((1, H)),     # bias, resident
            ],
            out_specs=pl.BlockSpec((tb, H), lambda b, s: (b, 0)),
            scratch_shapes=[pltpu.VMEM((tb, H), jnp.float32)],
        ),
        compiler_params=pltpu.CompilerParams(
            dimension_semantics=("parallel", "arbitrary"),
            vmem_limit_bytes=vmem_limit,
        ),
        cost_estimate=cost,
    )(embeds, wt, b2)


def metric_wrapper_forward(embeds, weight, bias, *, tb=None, ts=None, weight_dtype=None):
    """MetricWrapper forward (mean_rep pooling + MLPLayer) on CLMBR timeline embeddings.

    embeds: (B, S, H) timeline_model output; weight: (H, H) nn.Linear [out, in]; bias: (H,).
    Returns {'z1': (B, H) f32, 'z2': (B, H) f32} (identical in eval mode, no dropout).
    """
    B, S, H = embeds.shape
    e_dtype = jnp.dtype(embeds.dtype)
    itemsize = e_dtype.itemsize

    # One-time wrapper-side layout work (tiny operands only; embeds is passed through untouched).
    if weight_dtype is None:
        # Keep f32 weights for f32 embeds (bit-tight vs. PyTorch); drop to bf16 (MXU-native,
        # half the resident VMEM) when the model already runs in bf16.
        weight_dtype = jnp.bfloat16 if e_dtype == jnp.dtype(jnp.bfloat16) else weight.dtype
    wt = weight.T.astype(weight_dtype)                  # y = pooled @ W.T
    b2 = bias.reshape(1, H).astype(jnp.float32)

    # ---- B tiling: sublane-packing aware (8 rows f32 / 16 bf16 / 32 int8) -----------------
    tb_align = 8 * max(1, 4 // itemsize)
    if tb is None:
        if B <= tb_align:
            tb = B                                      # one full-extent block (always legal)
        else:
            # >= 2 blocks on the "parallel" B axis so both v7x TensorCores stream; cap at 64.
            tb = max(tb_align, min(64, _round_up(pl.cdiv(B, 2), tb_align)))

    # ---- Generation-aware VMEM budget -------------------------------------------------------
    vmem_cap = _vmem_capacity_bytes()
    internal_headroom = 8 << 20                         # Mosaic internal scratch + slack
    w_itemsize = jnp.dtype(weight_dtype).itemsize
    n_const_buf = 1 if _HAS_PIPELINE_MODE else 2
    fixed_bytes = (n_const_buf * (H * H * w_itemsize + H * 4)   # resident weight + bias
                   + tb * H * 4                                  # f32 accumulator scratch
                   + 2 * tb * H * 4)                             # double-buffered output
    if ts is None:
        # Largest double-buffered embeds stream that fits this generation's VMEM.
        stream_budget = max(4 << 20, int(0.75 * vmem_cap) - internal_headroom - fixed_bytes)
        per_s_bytes = max(1, tb * H * itemsize)
        max_ts = min(2048, max(8, _round_down((stream_budget // 2) // per_s_bytes, 8)))
        ts = S if S <= max_ts else max_ts

    mask_seq = (S % ts) != 0
    grid = (pl.cdiv(B, tb), pl.cdiv(S, ts))

    embeds_block_bytes = tb * ts * H * itemsize
    vmem_limit = int(min(int(0.9 * vmem_cap),
                         max(32 << 20,
                             2 * embeds_block_bytes + fixed_bytes + internal_headroom)))

    # Advisory cost estimate: tells XLA this call is memory-bound so neighbouring ops
    # (e.g. the CLMBR RNN producing the embeddings) can be scheduled to overlap.
    cost = pl.CostEstimate(
        flops=int(B * S * H + 2 * B * H * H),
        transcendentals=int(B * H),
        bytes_accessed=int(B * S * H * itemsize + H * H * w_itemsize + H * 4 + B * H * 4),
    )

    run = functools.partial(
        _build_and_run, embeds, wt, b2,
        grid=grid, tb=tb, ts=ts, H=H, mask_seq=mask_seq,
        inv_s=1.0 / float(S), seq_len=S, vmem_limit=vmem_limit, cost=cost,
        out_dtype=jnp.float32,
    )
    if _HAS_PIPELINE_MODE:
        try:
            z = run(single_buffer_consts=True)
        except Exception:
            # This JAX build rejected pipeline_mode=Buffered(1); fall back to default buffering.
            z = run(single_buffer_consts=False)
    else:
        z = run(single_buffer_consts=False)

    # z1 and z2: MetricWrapper runs timeline_model twice on the same batch['rnn']; in eval
    # mode (no dropout) both passes are identical, so one kernel output is duplicated here
    # (saves a redundant stream + VMEM->HBM writeback).
    return {"z1": z, "z2": z}


if __name__ == "__main__":
    key = jax.random.PRNGKey(0)
    k_emb, k_w, k_b, k_emb2 = jax.random.split(key, 4)

    # Case 1: small aligned shapes (B patients, S days per timeline, hidden H).
    B, S, H = 2, 8, 32
    embeds = jax.random.normal(k_emb, (B, S, H), dtype=jnp.float32)

    # Deterministic nn.Linear(H, H) parameter init (PyTorch default: U(-1/sqrt(H), 1/sqrt(H))).
    bound = 1.0 / jnp.sqrt(jnp.float32(H))
    weight = jax.random.uniform(k_w, (H, H), dtype=jnp.float32, minval=-bound, maxval=bound)
    bias = jax.random.uniform(k_b, (H,), dtype=jnp.float32, minval=-bound, maxval=bound)

    outputs = metric_wrapper_forward(embeds, weight, bias)
    jax.block_until_ready(outputs)

    z_ref = jnp.tanh(jnp.mean(embeds, axis=1) @ weight.T + bias)
    assert outputs["z1"].shape == (B, H) and outputs["z2"].shape == (B, H)
    assert jnp.allclose(outputs["z1"], z_ref, atol=1e-5, rtol=1e-5)
    assert jnp.allclose(outputs["z2"], z_ref, atol=1e-5, rtol=1e-5)

    # Case 2: ragged shapes exercising the in-kernel S-tail mask and a partial last B block
    # (no wrapper-side padding of the embeddings in either case).
    B2, S2 = 10, 20
    embeds2 = jax.random.normal(k_emb2, (B2, S2, H), dtype=jnp.float32)
    outputs2 = metric_wrapper_forward(embeds2, weight, bias, tb=8, ts=8)
    jax.block_until_ready(outputs2)

    z_ref2 = jnp.tanh(jnp.mean(embeds2, axis=1) @ weight.T + bias)
    assert outputs2["z1"].shape == (B2, H)
    assert jnp.allclose(outputs2["z1"], z_ref2, atol=1e-5, rtol=1e-5)
    assert jnp.allclose(outputs2["z2"], z_ref2, atol=1e-5, rtol=1e-5)

    print("KERNEL_OK")
</pallas_src>

<mosaic_0001>
module attributes {stable_mosaic.version = 11 : i64} {
  func.func @metric_kernel(%arg0: i32, %arg1: i32, %arg2: memref<2x8x32xf32, #tpu.memory_space<vmem>>, %arg3: memref<32x32xf32, #tpu.memory_space<vmem>>, %arg4: memref<1x32xf32, #tpu.memory_space<vmem>>, %arg5: memref<2x32xf32, #tpu.memory_space<vmem>>, %arg6: memref<2x32xf32, #tpu.memory_space<vmem>>) attributes {dimension_semantics = [#tpu.dimension_semantics<parallel>, #tpu.dimension_semantics<arbitrary>], iteration_bounds = array<i64: 1, 1>, scalar_prefetch = 0 : i64, scratch_operands = 1 : i64, tpu.core_type = #tpu.core_type<tc>, window_params = [{transform_indices = @transform_0, window_bounds = array<i64: 2, 8, 32>}, {pipeline_mode = #tpu.pipeline_mode<synchronous>, transform_indices = @transform_1, window_bounds = array<i64: 32, 32>}, {pipeline_mode = #tpu.pipeline_mode<synchronous>, transform_indices = @transform_2, window_bounds = array<i64: 1, 32>}, {transform_indices = @transform_3, window_bounds = array<i64: 2, 32>}]} {
    %c0_i32 = arith.constant 0 : i32
    %0 = arith.cmpi eq, %arg1, %c0_i32 : i32
    %1 = arith.extui %0 : i1 to i32
    %c0_i32_0 = arith.constant 0 : i32
    %2 = arith.cmpi ne, %1, %c0_i32_0 : i32
    scf.if %2 {
      %cst_9 = arith.constant 0.000000e+00 : f32
      %11 = vector.broadcast %cst_9 : f32 to vector<2x32xf32>
      %c0_10 = arith.constant 0 : index
      %c0_11 = arith.constant 0 : index
      %12 = vector.load %arg6[%c0_10, %c0_11] : memref<2x32xf32, #tpu.memory_space<vmem>>, vector<2x32xf32>
      tpu.vector_store %arg6[%c0_10, %c0_11], %11 {strides = array<i32>} : memref<2x32xf32, #tpu.memory_space<vmem>>, vector<2x32xf32>,
    } else {
    }
    %c0 = arith.constant 0 : index
    %c0_1 = arith.constant 0 : index
    %c0_2 = arith.constant 0 : index
    %3 = vector.load %arg2[%c0, %c0_1, %c0_2] : memref<2x8x32xf32, #tpu.memory_space<vmem>>, vector<2x8x32xf32>
    %c0_3 = arith.constant 0 : index
    %c0_4 = arith.constant 0 : index
    %4 = vector.load %arg6[%c0_3, %c0_4] : memref<2x32xf32, #tpu.memory_space<vmem>>, vector<2x32xf32>
    %cst = arith.constant dense<0.000000e+00> : vector<2x32xf32>
    %5 = vector.multi_reduction <add>, %3, %cst [1] : vector<2x8x32xf32> to vector<2x32xf32>
    %6 = arith.addf %4, %5 : vector<2x32xf32>
    %c0_5 = arith.constant 0 : index
    %c0_6 = arith.constant 0 : index
    %7 = vector.load %arg6[%c0_5, %c0_6] : memref<2x32xf32, #tpu.memory_space<vmem>>, vector<2x32xf32>
    tpu.vector_store %arg6[%c0_5, %c0_6], %6 {strides = array<i32>} : memref<2x32xf32, #tpu.memory_space<vmem>>, vector<2x32xf32>,
    %c0_i32_7 = arith.constant 0 : i32
    %8 = arith.cmpi eq, %arg1, %c0_i32_7 : i32
    %9 = arith.extui %8 : i1 to i32
    %c0_i32_8 = arith.constant 0 : i32
    %10 = arith.cmpi ne, %9, %c0_i32_8 : i32
    scf.if %10 {
      %c0_9 = arith.constant 0 : index
      %c0_10 = arith.constant 0 : index
      %11 = vector.load %arg6[%c0_9, %c0_10] : memref<2x32xf32, #tpu.memory_space<vmem>>, vector<2x32xf32>
      %cst_11 = arith.constant 1.250000e-01 : f32
      %12 = vector.broadcast %cst_11 : f32 to vector<2x32xf32>
      %13 = arith.mulf %11, %12 : vector<2x32xf32>
      %c0_12 = arith.constant 0 : index
      %c0_13 = arith.constant 0 : index
      %14 = vector.load %arg3[%c0_12, %c0_13] : memref<32x32xf32, #tpu.memory_space<vmem>>, vector<32x32xf32>
      %cst_14 = arith.constant dense<0.000000e+00> : vector<2x32xf32>
      %15 = tpu.matmul %13, %14, %cst_14 {dimension_numbers = #tpu.dot_dimension_numbers<[1], [0], [0], [1], [0, 0, 1, 1], [], []>} : vector<2x32xf32>, vector<32x32xf32>, vector<2x32xf32> -> vector<2x32xf32>
      %c0_15 = arith.constant 0 : index
      %c0_16 = arith.constant 0 : index
      %16 = vector.load %arg4[%c0_15, %c0_16] : memref<1x32xf32, #tpu.memory_space<vmem>>, vector<1x32xf32>
      %17 = vector.broadcast %16 : vector<1x32xf32> to vector<2x32xf32>
      %18 = arith.addf %15, %17 : vector<2x32xf32>
      %19 = math.tanh %18 : vector<2x32xf32>
      %c0_17 = arith.constant 0 : index
      %c0_18 = arith.constant 0 : index
      %20 = vector.load %arg5[%c0_17, %c0_18] : memref<2x32xf32, #tpu.memory_space<vmem>>, vector<2x32xf32>
      tpu.vector_store %arg5[%c0_17, %c0_18], %19 {strides = array<i32>} : memref<2x32xf32, #tpu.memory_space<vmem>>, vector<2x32xf32>,
    } else {
    }
    return
  }
  func.func @transform_0(%arg0: i32, %arg1: i32) -> (i32, i32, i32) {
    %c0_i32 = arith.constant 0 : i32
    %c0_i32_0 = arith.constant 0 : i32
    return %arg0, %arg1, %c0_i32 : i32, i32, i32
  }
  func.func @transform_1(%arg0: i32, %arg1: i32) -> (i32, i32) {
    %c0_i32 = arith.constant 0 : i32
    %c0_i32_0 = arith.constant 0 : i32
    %c0_i32_1 = arith.constant 0 : i32
    return %c0_i32, %c0_i32_0 : i32, i32
  }
  func.func @transform_2(%arg0: i32, %arg1: i32) -> (i32, i32) {
    %c0_i32 = arith.constant 0 : i32
    %c0_i32_0 = arith.constant 0 : i32
    %c0_i32_1 = arith.constant 0 : i32
    return %c0_i32, %c0_i32_0 : i32, i32
  }
  func.func @transform_3(%arg0: i32, %arg1: i32) -> (i32, i32) {
    %c0_i32 = arith.constant 0 : i32
    %c0_i32_0 = arith.constant 0 : i32
    return %arg0, %c0_i32 : i32, i32
  }
}

module attributes {stable_mosaic.version = 11 : i64} {
  func.func @metric_kernel(%arg0: i32, %arg1: i32, %arg2: memref<2x8x32xf32, #tpu.memory_space<vmem>>, %arg3: memref<32x32xf32, #tpu.memory_space<vmem>>, %arg4: memref<1x32xf32, #tpu.memory_space<vmem>>, %arg5: memref<2x32xf32, #tpu.memory_space<vmem>>, %arg6: memref<2x32xf32, #tpu.memory_space<vmem>>) attributes {dimension_semantics = [#tpu.dimension_semantics<parallel>, #tpu.dimension_semantics<arbitrary>], iteration_bounds = array<i64: 1, 1>, scalar_prefetch = 0 : i64, scratch_operands = 1 : i64, tpu.core_type = #tpu.core_type<tc>, window_params = [{transform_indices = @transform_0, window_bounds = array<i64: 2, 8, 32>}, {pipeline_mode = #tpu.pipeline_mode<synchronous>, transform_indices = @transform_1, window_bounds = array<i64: 32, 32>}, {pipeline_mode = #tpu.pipeline_mode<synchronous>, transform_indices = @transform_2, window_bounds = array<i64: 1, 32>}, {transform_indices = @transform_3, window_bounds = array<i64: 2, 32>}]} {
    %c0_i32 = arith.constant 0 : i32
    %0 = arith.cmpi eq, %arg1, %c0_i32 : i32
    %1 = arith.extui %0 : i1 to i32
    %c0_i32_0 = arith.constant 0 : i32
    %2 = arith.cmpi ne, %1, %c0_i32_0 : i32
    scf.if %2 {
      %cst_9 = arith.constant 0.000000e+00 : f32
      %11 = vector.broadcast %cst_9 : f32 to vector<2x32xf32>
      %c0_10 = arith.constant 0 : index
      %c0_11 = arith.constant 0 : index
      %12 = vector.load %arg6[%c0_10, %c0_11] : memref<2x32xf32, #tpu.memory_space<vmem>>, vector<2x32xf32>
      tpu.vector_store %arg6[%c0_10, %c0_11], %11 {strides = array<i32>} : memref<2x32xf32, #tpu.memory_space<vmem>>, vector<2x32xf32>,
    } else {
    }
    %c0 = arith.constant 0 : index
    %c0_1 = arith.constant 0 : index
    %c0_2 = arith.constant 0 : index
    %3 = vector.load %arg2[%c0, %c0_1, %c0_2] : memref<2x8x32xf32, #tpu.memory_space<vmem>>, vector<2x8x32xf32>
    %c0_3 = arith.constant 0 : index
    %c0_4 = arith.constant 0 : index
    %4 = vector.load %arg6[%c0_3, %c0_4] : memref<2x32xf32, #tpu.memory_space<vmem>>, vector<2x32xf32>
    %cst = arith.constant dense<0.000000e+00> : vector<2x32xf32>
    %5 = vector.multi_reduction <add>, %3, %cst [1] : vector<2x8x32xf32> to vector<2x32xf32>
    %6 = arith.addf %4, %5 : vector<2x32xf32>
    %c0_5 = arith.constant 0 : index
    %c0_6 = arith.constant 0 : index
    %7 = vector.load %arg6[%c0_5, %c0_6] : memref<2x32xf32, #tpu.memory_space<vmem>>, vector<2x32xf32>
    tpu.vector_store %arg6[%c0_5, %c0_6], %6 {strides = array<i32>} : memref<2x32xf32, #tpu.memory_space<vmem>>, vector<2x32xf32>,
    %c0_i32_7 = arith.constant 0 : i32
    %8 = arith.cmpi eq, %arg1, %c0_i32_7 : i32
    %9 = arith.extui %8 : i1 to i32
    %c0_i32_8 = arith.constant 0 : i32
    %10 = arith.cmpi ne, %9, %c0_i32_8 : i32
    scf.if %10 {
      %c0_9 = arith.constant 0 : index
      %c0_10 = arith.constant 0 : index
      %11 = vector.load %arg6[%c0_9, %c0_10] : memref<2x32xf32, #tpu.memory_space<vmem>>, vector<2x32xf32>
      %cst_11 = arith.constant 1.250000e-01 : f32
      %12 = vector.broadcast %cst_11 : f32 to vector<2x32xf32>
      %13 = arith.mulf %11, %12 : vector<2x32xf32>
      %c0_12 = arith.constant 0 : index
      %c0_13 = arith.constant 0 : index
      %14 = vector.load %arg3[%c0_12, %c0_13] : memref<32x32xf32, #tpu.memory_space<vmem>>, vector<32x32xf32>
      %cst_14 = arith.constant dense<0.000000e+00> : vector<2x32xf32>
      %15 = tpu.matmul %13, %14, %cst_14 {dimension_numbers = #tpu.dot_dimension_numbers<[1], [0], [0], [1], [0, 0, 1, 1], [], []>} : vector<2x32xf32>, vector<32x32xf32>, vector<2x32xf32> -> vector<2x32xf32>
      %c0_15 = arith.constant 0 : index
      %c0_16 = arith.constant 0 : index
      %16 = vector.load %arg4[%c0_15, %c0_16] : memref<1x32xf32, #tpu.memory_space<vmem>>, vector<1x32xf32>
      %17 = vector.broadcast %16 : vector<1x32xf32> to vector<2x32xf32>
      %18 = arith.addf %15, %17 : vector<2x32xf32>
      %19 = math.tanh %18 : vector<2x32xf32>
      %c0_17 = arith.constant 0 : index
      %c0_18 = arith.constant 0 : index
      %20 = vector.load %arg5[%c0_17, %c0_18] : memref<2x32xf32, #tpu.memory_space<vmem>>, vector<2x32xf32>
      tpu.vector_store %arg5[%c0_17, %c0_18], %19 {strides = array<i32>} : memref<2x32xf32, #tpu.memory_space<vmem>>, vector<2x32xf32>,
    } else {
    }
    return
  }
  func.func @transform_0(%arg0: i32, %arg1: i32) -> (i32, i32, i32) {
    %c0_i32 = arith.constant 0 : i32
    %c0_i32_0 = arith.constant 0 : i32
    return %arg0, %arg1, %c0_i32 : i32, i32, i32
  }
  func.func @transform_1(%arg0: i32, %arg1: i32) -> (i32, i32) {
    %c0_i32 = arith.constant 0 : i32
    %c0_i32_0 = arith.constant 0 : i32
    %c0_i32_1 = arith.constant 0 : i32
    return %c0_i32, %c0_i32_0 : i32, i32
  }
  func.func @transform_2(%arg0: i32, %arg1: i32) -> (i32, i32) {
    %c0_i32 = arith.constant 0 : i32
    %c0_i32_0 = arith.constant 0 : i32
    %c0_i32_1 = arith.constant 0 : i32
    return %c0_i32, %c0_i32_0 : i32, i32
  }
  func.func @transform_3(%arg0: i32, %arg1: i32) -> (i32, i32) {
    %c0_i32 = arith.constant 0 : i32
    %c0_i32_0 = arith.constant 0 : i32
    return %arg0, %c0_i32 : i32, i32
  }
}

</mosaic_0001>

<llo_original>
// kernel: tpu_custom_call.1
$region0: #{tpu_custom_call.1}
  #allocation0 [shape = 'u32[]', space=smem, size = 0x4, offset = 0x4, fixed_abs, tag = 'smem constant byte address 0x4 - core index']
  #allocation1 [shape = 'u32[144,128]{1,0:T(1,128)}', space=vmem, size = 0x12000, scoped, tag = 'internal scratch']
  #allocation2 [shape = 'f32[2,32]{1,0:T(2,128)}', space=vmem, size = 0x400, scoped, tag = 'scratch operand']
  %s0 = inlined_call_operand.hbm [shape: f32[2,8,32], index: 0, kind: input, shape index: {}]
  %s1 = inlined_call_operand.hbm [shape: f32[32,32], index: 1, kind: input, shape index: {}]
  %s2 = inlined_call_operand.vmem [shape: f32[1,32], index: 2, kind: input, shape index: {}]
  %s3 = inlined_call_operand.hbm [shape: f32[2,32], index: 3, kind: output, shape index: {}]
  %s4 = sld [smem:[#allocation0]]
  $region38: #{tpu_custom_call.1} parent=0
    _
  %s6 = ssub.s32 1, %s4
  %s7 = scalar_select 0, %s6, %s4
  $region1: #{tpu_custom_call.1} parent=0
    #allocation3 [shape = 'u8[8192]{0}', space=vmem, size = 0x2000, scoped, tag = 'input window, operand 0, single buffered']
    #allocation4 [shape = 's32[1]{0}', space=sflag, size = 0x4, scoped, tag = 'scoped memory for tpu_custom_call.1']
    #allocation5 [shape = 's32[1]{0}', space=sflag, size = 0x4, scoped, tag = 'scoped memory for tpu_custom_call.1']
    #allocation6 [shape = 'u8[16384]{0}', space=vmem, size = 0x4000, scoped, tag = 'input window, operand 1, single buffered']
    #allocation7 [shape = 's32[1]{0}', space=sflag, size = 0x4, scoped, tag = 'scoped memory for tpu_custom_call.1']
    #allocation8 [shape = 'u8[1024]{0}', space=vmem, size = 0x400, scoped, tag = 'output window, operand 0, single buffered']
    %8 = vsyncpa [#allocation4], 0
    %9 = vsyncpa [#allocation7], 0
    %10 = vsyncpa [#allocation5], 0
    // Predicated region
    $region2: #{tpu_custom_call.1} parent=1 // pred_check
      _
    $region3: #{tpu_custom_call.1} parent=1 // pred_check_branch
      %12 = sbr.rel (0) target = $region5
    $region4: #{tpu_custom_call.1} parent=1 // pred_region
      %s14 = ssub.s32 256, 256
      %15 = vsyncadd [#allocation4], %s14
      %s16 = sshll.u32 [#allocation3], 4
      %s17 = int_to_ptr.vmem [resolvable:$true] %s16
      %22 = dma.hbm_to_vmem [thread:$0]  %s0, 256, %s17, [#allocation4], 128, 128, 8
    $region5: #{tpu_custom_call.1} parent=1 // pred_fallthru
      _
    // Predicated region
    $region6: #{tpu_custom_call.1} parent=1 // pred_check
      _
    $region7: #{tpu_custom_call.1} parent=1 // pred_check_branch
      %24 = sbr.rel (0) target = $region9
    $region8: #{tpu_custom_call.1} parent=1 // pred_region
      %s26 = ssub.s32 512, 512
      %27 = vsyncadd [#allocation7], %s26
      %s28 = sshll.u32 [#allocation6], 4
      %s29 = int_to_ptr.vmem [resolvable:$true] %s28
      %34 = dma.hbm_to_vmem [thread:$0]  %s1, 512, %s29, [#allocation7], 128, 128, 8
    $region9: #{tpu_custom_call.1} parent=1 // pred_fallthru
      _
    // Predicated region
    $region10: #{tpu_custom_call.1} parent=1 // pred_check
      _
    $region11: #{tpu_custom_call.1} parent=1 // pred_check_branch
      %36 = sbr.rel (0) target = $region13
    $region12: #{tpu_custom_call.1} parent=1 // pred_region
      _
    $region13: #{tpu_custom_call.1} parent=1 // pred_fallthru
      _
    // Predicated region
    $region14: #{tpu_custom_call.1} parent=1 // pred_check
      _
    $region15: #{tpu_custom_call.1} parent=1 // pred_check_branch
      %38 = sbr.rel (0) target = $region17
    $region16: #{tpu_custom_call.1} parent=1 // pred_region
      %39 = dma.done [#allocation4], 256
    $region17: #{tpu_custom_call.1} parent=1 // pred_fallthru
      _
    // Predicated region
    $region18: #{tpu_custom_call.1} parent=1 // pred_check
      _
    $region19: #{tpu_custom_call.1} parent=1 // pred_check_branch
      %41 = sbr.rel (0) target = $region21
    $region20: #{tpu_custom_call.1} parent=1 // pred_region
      %42 = dma.done [#allocation7], 512
    $region21: #{tpu_custom_call.1} parent=1 // pred_fallthru
      _
    %p43 = scmp.eq.s32.totalorder 0, 0
    // Predicated region
    $region22: #{tpu_custom_call.1} parent=1 // pred_check
      %p44 = pneg %p43
    $region23: #{tpu_custom_call.1} parent=1 // pred_check_branch
      %46 = sbr.rel (%p44) target = $region25
    $region24: #{tpu_custom_call.1} parent=1 // pred_region
      %vm47 = vcmask 254976
      %48 = vst.msk [vmem:[#allocation2] sm:$0x3] %vm47, 0.0
    $region25: #{tpu_custom_call.1} parent=1 // pred_fallthru
      _
    %v49 = vld [vmem:[#allocation3] sm:$0xff]
    %v50 = vld [vmem:[#allocation3 + $0x8] sm:$0xff]
    %v51 = vld [vmem:[#allocation2] sm:$0x3]
    %vm52 = vcmask 261120
    %v53 = vsel %vm52, %v49, 0.0
    %v54 = vrot.slane %v53, 4
    %v55 = vadd.f32 %v53, %v54
    %v56 = vrot.slane %v55, 2
    %v57 = vadd.f32 %v55, %v56
    %v58 = vrot.slane %v57, 1
    %v59 = vadd.f32 %v57, %v58
    %v60 = vsel %vm52, %v50, 0.0
    %v61 = vrot.slane %v60, 4
    %v62 = vadd.f32 %v60, %v61
    %v63 = vrot.slane %v62, 2
    %v64 = vadd.f32 %v62, %v63
    %v65 = vrot.slane %v64, 1
    %v66 = vadd.f32 %v64, %v65
    %vm69 = vcmask 1041409
    %v70 = vsel %vm69, %v66, %v59
    %v72 = vadd.f32 %v51, %v70
    %vm73 = vcmask 254976
    %74 = vst.msk [vmem:[#allocation2] sm:$0x3] %vm73, %v72
    // Predicated region
    $region26: #{tpu_custom_call.1} parent=1 // pred_check
      %p75 = pneg %p43
    $region27: #{tpu_custom_call.1} parent=1 // pred_check_branch
      %77 = sbr.rel (%p75) target = $region29
    $region28: #{tpu_custom_call.1} parent=1 // pred_region
      %v78 = vld [vmem:[#allocation2] sm:$0x3]
      %v79 = vmul.f32 %v78, 0.125
      %v80 = vld [vmem:[#allocation6] sm:$0xff]
      %v81 = vld [vmem:[#allocation6 + $0x8] sm:$0xff]
      %v82 = vld [vmem:[#allocation6 + $0x10] sm:$0xff]
      %v83 = vld [vmem:[#allocation6 + $0x18] sm:$0xff]
      %v84 = vld [vmem:[%s2] sm:$0x1]
      %v86 = vlaneseq
      %v87 = vshrl.u32 %v86, 7
      %v88 = vsub.s32 0, %v87
      %v89 = vrot.slane %v84, %v88
      %v92 = vsel %vm52, %v79, 0
      %94 = vmatprep.subr.mxu0 0.0
      %95 = vmatpush1.msra.mxu0 %v80
      %96 = vmatprep.subr.mxu0 0.0
      %97 = vmatpush1.msra.mxu0 %v81
      %98 = vmatprep.subr.mxu0 0.0
      %99 = vmatpush1.msra.mxu0 %v82
      %100 = vmatprep.subr.mxu0 0.0
      %101 = vmatpush1.msra.mxu0 %v83
      %102 = vmatprep.subr.mxu0 0.0
      %103 = vmatpush1.msra.mxu0 0.0
      %104 = vmatprep.subr.mxu0 0.0
      %105 = vmatpush1.msra.mxu0 0.0
      %106 = vmatprep.subr.mxu0 0.0
      %107 = vmatpush1.msra.mxu0 0.0
      %108 = vmatprep.subr.mxu0 0.0
      %109 = vmatpush1.msra.mxu0 0.0
      %110 = vmatprep.subr.mxu0 0.0
      %111 = vmatpush1.msra.mxu0 0.0
      %112 = vmatprep.subr.mxu0 0.0
      %113 = vmatpush1.msra.mxu0 0.0
      %114 = vmatprep.subr.mxu0 0.0
      %115 = vmatpush1.msra.mxu0 0.0
      %116 = vmatprep.subr.mxu0 0.0
      %117 = vmatpush1.msra.mxu0 0.0
      %118 = vmatprep.subr.mxu0 0.0
      %119 = vmatpush1.msra.mxu0 0.0
      %120 = vmatprep.subr.mxu0 0.0
      %121 = vmatpush1.msra.mxu0 0.0
      %122 = vmatprep.subr.mxu0 0.0
      %123 = vmatpush1.msra.mxu0 0.0
      %124 = vmatprep.subr.mxu0 0.0
      %125 = vmatpush1.msra.mxu0 0.0
      %126 = vmatprep.subr.mxu0 0.0
      %127 = vmatpush1.msra.mxu0 0.0
      %128 = vmatprep.subr.mxu0 0.0
      %129 = vmatpush1.msra.mxu0 0.0
      %130 = vmatprep.subr.mxu0 0.0
      %131 = vmatpush1.msra.mxu0 0.0
      %132 = vmatprep.subr.mxu0 0.0
      %133 = vmatpush1.msra.mxu0 0.0
      %134 = vmatprep.subr.mxu0 0.0
      %135 = vmatpush1.msra.mxu0 0.0
      %136 = vmatprep.subr.mxu0 0.0
      %137 = vmatpush1.msra.mxu0 0.0
      %138 = vmatprep.subr.mxu0 0.0
      %139 = vmatpush1.msra.mxu0 0.0
      %140 = vmatprep.subr.mxu0 0.0
      %141 = vmatpush1.msra.mxu0 0.0
      %142 = vmatprep.subr.mxu0 0.0
      %143 = vmatpush1.msra.mxu0 0.0
      %144 = vmatprep.subr.mxu0 0.0
      %145 = vmatpush1.msra.mxu0 0.0
      %146 = vmatprep.subr.mxu0 0.0
      %147 = vmatpush1.msra.mxu0 0.0
      %148 = vmatprep.subr.mxu0 0.0
      %149 = vmatpush1.msra.mxu0 0.0
      %150 = vmatprep.subr.mxu0 0.0
      %151 = vmatpush1.msra.mxu0 0.0
      %152 = vmatprep.subr.mxu0 0.0
      %153 = vmatpush1.msra.mxu0 0.0
      %154 = vmatprep.subr.mxu0 0.0
      %155 = vmatpush1.msra.mxu0 0.0
      %156 = vmatprep.subr.mxu0 0.0
      %157 = vmatpush1.msra.mxu0 0.0
      %158 = vmatprep.mubr.f32.mxu0 0.0
      %159 = vmatmul.mubr.f32.gmra.mrb[0].mxu0 %v92
      %v160 = vpop.f32.mrb[0].mxu0
      %v161 = vadd.f32 %v89, %v160
      %v162 = vpop.f32.mrb[0].mxu0
      %163 = vdwg.mxu0
      %v164 = vtanh.pop %v161
      %165 = vst.msk [vmem:[#allocation8] sm:$0x3] %vm73, %v164
    $region29: #{tpu_custom_call.1} parent=1 // pred_fallthru
      _
    // Predicated region
    $region30: #{tpu_custom_call.1} parent=1 // pred_check
      _
    $region31: #{tpu_custom_call.1} parent=1 // pred_check_branch
      %167 = sbr.rel (0) target = $region33
    $region32: #{tpu_custom_call.1} parent=1 // pred_region
      %s169 = ssub.s32 32, 32
      %170 = vsyncadd [#allocation5], %s169
      %s172 = sshll.u32 [#allocation8], 4
      %s173 = int_to_ptr.vmem [resolvable:$true] %s172
      %175 = dma.vmem_to_hbm [thread:$0]  %s173, 32, %s3, [#allocation5]
    $region33: #{tpu_custom_call.1} parent=1 // pred_fallthru
      _
    // Predicated region
    $region34: #{tpu_custom_call.1} parent=1 // pred_check
      _
    $region35: #{tpu_custom_call.1} parent=1 // pred_check_branch
      %177 = sbr.rel (0) target = $region37
    $region36: #{tpu_custom_call.1} parent=1 // pred_region
      %178 = dma.done [#allocation5], 32
    $region37: #{tpu_custom_call.1} parent=1 // pred_fallthru
      _
    %179 = vsyncpa [#allocation4], 1
    %180 = vsyncpa [#allocation7], 1
    %181 = vsyncpa [#allocation5], 1

// kernel: tpu_custom_call.1
$region0: #{tpu_custom_call.1}
  #allocation0 [shape = 'u32[]', space=smem, size = 0x4, offset = 0x4, fixed_abs, tag = 'smem constant byte address 0x4 - core index']
  #allocation1 [shape = 'u32[144,128]{1,0:T(1,128)}', space=vmem, size = 0x12000, scoped, tag = 'internal scratch']
  #allocation2 [shape = 'f32[2,32]{1,0:T(2,128)}', space=vmem, size = 0x400, scoped, tag = 'scratch operand']
  %s0 = inlined_call_operand.hbm [shape: f32[2,8,32], index: 0, kind: input, shape index: {}]
  %s1 = inlined_call_operand.hbm [shape: f32[32,32], index: 1, kind: input, shape index: {}]
  %s2 = inlined_call_operand.vmem [shape: f32[1,32], index: 2, kind: input, shape index: {}]
  %s3 = inlined_call_operand.hbm [shape: f32[2,32], index: 3, kind: output, shape index: {}]
  %s4 = sld [smem:[#allocation0]]
  $region38: #{tpu_custom_call.1} parent=0
    _
  %s6 = ssub.s32 1, %s4
  %s7 = scalar_select 0, %s6, %s4
  $region1: #{tpu_custom_call.1} parent=0
    #allocation3 [shape = 'u8[8192]{0}', space=vmem, size = 0x2000, scoped, tag = 'input window, operand 0, single buffered']
    #allocation4 [shape = 's32[1]{0}', space=sflag, size = 0x4, scoped, tag = 'scoped memory for tpu_custom_call.1']
    #allocation5 [shape = 's32[1]{0}', space=sflag, size = 0x4, scoped, tag = 'scoped memory for tpu_custom_call.1']
    #allocation6 [shape = 'u8[16384]{0}', space=vmem, size = 0x4000, scoped, tag = 'input window, operand 1, single buffered']
    #allocation7 [shape = 's32[1]{0}', space=sflag, size = 0x4, scoped, tag = 'scoped memory for tpu_custom_call.1']
    #allocation8 [shape = 'u8[1024]{0}', space=vmem, size = 0x400, scoped, tag = 'output window, operand 0, single buffered']
    %8 = vsyncpa [#allocation4], 0
    %9 = vsyncpa [#allocation7], 0
    %10 = vsyncpa [#allocation5], 0
    // Predicated region
    $region2: #{tpu_custom_call.1} parent=1 // pred_check
      _
    $region3: #{tpu_custom_call.1} parent=1 // pred_check_branch
      %12 = sbr.rel (0) target = $region5
    $region4: #{tpu_custom_call.1} parent=1 // pred_region
      %s14 = ssub.s32 256, 256
      %15 = vsyncadd [#allocation4], %s14
      %s16 = sshll.u32 [#allocation3], 4
      %s17 = int_to_ptr.vmem [resolvable:$true] %s16
      %22 = dma.hbm_to_vmem [thread:$0]  %s0, 256, %s17, [#allocation4], 128, 128, 8
    $region5: #{tpu_custom_call.1} parent=1 // pred_fallthru
      _
    // Predicated region
    $region6: #{tpu_custom_call.1} parent=1 // pred_check
      _
    $region7: #{tpu_custom_call.1} parent=1 // pred_check_branch
      %24 = sbr.rel (0) target = $region9
    $region8: #{tpu_custom_call.1} parent=1 // pred_region
      %s26 = ssub.s32 512, 512
      %27 = vsyncadd [#allocation7], %s26
      %s28 = sshll.u32 [#allocation6], 4
      %s29 = int_to_ptr.vmem [resolvable:$true] %s28
      %34 = dma.hbm_to_vmem [thread:$0]  %s1, 512, %s29, [#allocation7], 128, 128, 8
    $region9: #{tpu_custom_call.1} parent=1 // pred_fallthru
      _
    // Predicated region
    $region10: #{tpu_custom_call.1} parent=1 // pred_check
      _
    $region11: #{tpu_custom_call.1} parent=1 // pred_check_branch
      %36 = sbr.rel (0) target = $region13
    $region12: #{tpu_custom_call.1} parent=1 // pred_region
      _
    $region13: #{tpu_custom_call.1} parent=1 // pred_fallthru
      _
    // Predicated region
    $region14: #{tpu_custom_call.1} parent=1 // pred_check
      _
    $region15: #{tpu_custom_call.1} parent=1 // pred_check_branch
      %38 = sbr.rel (0) target = $region17
    $region16: #{tpu_custom_call.1} parent=1 // pred_region
      %39 = dma.done [#allocation4], 256
    $region17: #{tpu_custom_call.1} parent=1 // pred_fallthru
      _
    // Predicated region
    $region18: #{tpu_custom_call.1} parent=1 // pred_check
      _
    $region19: #{tpu_custom_call.1} parent=1 // pred_check_branch
      %41 = sbr.rel (0) target = $region21
    $region20: #{tpu_custom_call.1} parent=1 // pred_region
      %42 = dma.done [#allocation7], 512
    $region21: #{tpu_custom_call.1} parent=1 // pred_fallthru
      _
    %p43 = scmp.eq.s32.totalorder 0, 0
    // Predicated region
    $region22: #{tpu_custom_call.1} parent=1 // pred_check
      %p44 = pneg %p43
    $region23: #{tpu_custom_call.1} parent=1 // pred_check_branch
      %46 = sbr.rel (%p44) target = $region25
    $region24: #{tpu_custom_call.1} parent=1 // pred_region
      %vm47 = vcmask 254976
      %48 = vst.msk [vmem:[#allocation2] sm:$0x3] %vm47, 0.0
    $region25: #{tpu_custom_call.1} parent=1 // pred_fallthru
      _
    %v49 = vld [vmem:[#allocation3] sm:$0xff]
    %v50 = vld [vmem:[#allocation3 + $0x8] sm:$0xff]
    %v51 = vld [vmem:[#allocation2] sm:$0x3]
    %vm52 = vcmask 261120
    %v53 = vsel %vm52, %v49, 0.0
    %v54 = vrot.slane %v53, 4
    %v55 = vadd.f32 %v53, %v54
    %v56 = vrot.slane %v55, 2
    %v57 = vadd.f32 %v55, %v56
    %v58 = vrot.slane %v57, 1
    %v59 = vadd.f32 %v57, %v58
    %v60 = vsel %vm52, %v50, 0.0
    %v61 = vrot.slane %v60, 4
    %v62 = vadd.f32 %v60, %v61
    %v63 = vrot.slane %v62, 2
    %v64 = vadd.f32 %v62, %v63
    %v65 = vrot.slane %v64, 1
    %v66 = vadd.f32 %v64, %v65
    %vm69 = vcmask 1041409
    %v70 = vsel %vm69, %v66, %v59
    %v72 = vadd.f32 %v51, %v70
    %vm73 = vcmask 254976
    %74 = vst.msk [vmem:[#allocation2] sm:$0x3] %vm73, %v72
    // Predicated region
    $region26: #{tpu_custom_call.1} parent=1 // pred_check
      %p75 = pneg %p43
    $region27: #{tpu_custom_call.1} parent=1 // pred_check_branch
      %77 = sbr.rel (%p75) target = $region29
    $region28: #{tpu_custom_call.1} parent=1 // pred_region
      %v78 = vld [vmem:[#allocation2] sm:$0x3]
      %v79 = vmul.f32 %v78, 0.125
      %v80 = vld [vmem:[#allocation6] sm:$0xff]
      %v81 = vld [vmem:[#allocation6 + $0x8] sm:$0xff]
      %v82 = vld [vmem:[#allocation6 + $0x10] sm:$0xff]
      %v83 = vld [vmem:[#allocation6 + $0x18] sm:$0xff]
      %v84 = vld [vmem:[%s2] sm:$0x1]
      %v86 = vlaneseq
      %v87 = vshrl.u32 %v86, 7
      %v88 = vsub.s32 0, %v87
      %v89 = vrot.slane %v84, %v88
      %v92 = vsel %vm52, %v79, 0
      %94 = vmatprep.subr.mxu0 0.0
      %95 = vmatpush1.msra.mxu0 %v80
      %96 = vmatprep.subr.mxu0 0.0
      %97 = vmatpush1.msra.mxu0 %v81
      %98 = vmatprep.subr.mxu0 0.0
      %99 = vmatpush1.msra.mxu0 %v82
      %100 = vmatprep.subr.mxu0 0.0
      %101 = vmatpush1.msra.mxu0 %v83
      %102 = vmatprep.subr.mxu0 0.0
      %103 = vmatpush1.msra.mxu0 0.0
      %104 = vmatprep.subr.mxu0 0.0
      %105 = vmatpush1.msra.mxu0 0.0
      %106 = vmatprep.subr.mxu0 0.0
      %107 = vmatpush1.msra.mxu0 0.0
      %108 = vmatprep.subr.mxu0 0.0
      %109 = vmatpush1.msra.mxu0 0.0
      %110 = vmatprep.subr.mxu0 0.0
      %111 = vmatpush1.msra.mxu0 0.0
      %112 = vmatprep.subr.mxu0 0.0
      %113 = vmatpush1.msra.mxu0 0.0
      %114 = vmatprep.subr.mxu0 0.0
      %115 = vmatpush1.msra.mxu0 0.0
      %116 = vmatprep.subr.mxu0 0.0
      %117 = vmatpush1.msra.mxu0 0.0
      %118 = vmatprep.subr.mxu0 0.0
      %119 = vmatpush1.msra.mxu0 0.0
      %120 = vmatprep.subr.mxu0 0.0
      %121 = vmatpush1.msra.mxu0 0.0
      %122 = vmatprep.subr.mxu0 0.0
      %123 = vmatpush1.msra.mxu0 0.0
      %124 = vmatprep.subr.mxu0 0.0
      %125 = vmatpush1.msra.mxu0 0.0
      %126 = vmatprep.subr.mxu0 0.0
      %127 = vmatpush1.msra.mxu0 0.0
      %128 = vmatprep.subr.mxu0 0.0
      %129 = vmatpush1.msra.mxu0 0.0
      %130 = vmatprep.subr.mxu0 0.0
      %131 = vmatpush1.msra.mxu0 0.0
      %132 = vmatprep.subr.mxu0 0.0
      %133 = vmatpush1.msra.mxu0 0.0
      %134 = vmatprep.subr.mxu0 0.0
      %135 = vmatpush1.msra.mxu0 0.0
      %136 = vmatprep.subr.mxu0 0.0
      %137 = vmatpush1.msra.mxu0 0.0
      %138 = vmatprep.subr.mxu0 0.0
      %139 = vmatpush1.msra.mxu0 0.0
      %140 = vmatprep.subr.mxu0 0.0
      %141 = vmatpush1.msra.mxu0 0.0
      %142 = vmatprep.subr.mxu0 0.0
      %143 = vmatpush1.msra.mxu0 0.0
      %144 = vmatprep.subr.mxu0 0.0
      %145 = vmatpush1.msra.mxu0 0.0
      %146 = vmatprep.subr.mxu0 0.0
      %147 = vmatpush1.msra.mxu0 0.0
      %148 = vmatprep.subr.mxu0 0.0
      %149 = vmatpush1.msra.mxu0 0.0
      %150 = vmatprep.subr.mxu0 0.0
      %151 = vmatpush1.msra.mxu0 0.0
      %152 = vmatprep.subr.mxu0 0.0
      %153 = vmatpush1.msra.mxu0 0.0
      %154 = vmatprep.subr.mxu0 0.0
      %155 = vmatpush1.msra.mxu0 0.0
      %156 = vmatprep.subr.mxu0 0.0
      %157 = vmatpush1.msra.mxu0 0.0
      %158 = vmatprep.mubr.f32.mxu0 0.0
      %159 = vmatmul.mubr.f32.gmra.mrb[0].mxu0 %v92
      %v160 = vpop.f32.mrb[0].mxu0
      %v161 = vadd.f32 %v89, %v160
      %v162 = vpop.f32.mrb[0].mxu0
      %163 = vdwg.mxu0
      %v164 = vtanh.pop %v161
      %165 = vst.msk [vmem:[#allocation8] sm:$0x3] %vm73, %v164
    $region29: #{tpu_custom_call.1} parent=1 // pred_fallthru
      _
    // Predicated region
    $region30: #{tpu_custom_call.1} parent=1 // pred_check
      _
    $region31: #{tpu_custom_call.1} parent=1 // pred_check_branch
      %167 = sbr.rel (0) target = $region33
    $region32: #{tpu_custom_call.1} parent=1 // pred_region
      %s169 = ssub.s32 32, 32
      %170 = vsyncadd [#allocation5], %s169
      %s172 = sshll.u32 [#allocation8], 4
      %s173 = int_to_ptr.vmem [resolvable:$true] %s172
      %175 = dma.vmem_to_hbm [thread:$0]  %s173, 32, %s3, [#allocation5]
    $region33: #{tpu_custom_call.1} parent=1 // pred_fallthru
      _
    // Predicated region
    $region34: #{tpu_custom_call.1} parent=1 // pred_check
      _
    $region35: #{tpu_custom_call.1} parent=1 // pred_check_branch
      %177 = sbr.rel (0) target = $region37
    $region36: #{tpu_custom_call.1} parent=1 // pred_region
      %178 = dma.done [#allocation5], 32
    $region37: #{tpu_custom_call.1} parent=1 // pred_fallthru
      _
    %179 = vsyncpa [#allocation4], 1
    %180 = vsyncpa [#allocation7], 1
    %181 = vsyncpa [#allocation5], 1

</llo_original>
